<compile_context>
chip_gen: v7x
topology: tpu7x:2x2x1
jax: 0.10.0
libtpu: 0.0.40
codegen_flags: <defaults>
</compile_context>

<pallas_src>
import functools
import math

import jax
import jax.numpy as jnp
from jax.experimental import pallas as pl
from jax.experimental.pallas import tpu as pltpu

EPS = 1e-5


# ---------------------------------------------------------------------------
# helpers
# ---------------------------------------------------------------------------
def _vmem_capacity_bytes():
    try:
        return int(pltpu.get_tpu_info().vmem_capacity_bytes)  # generation-aware
    except Exception:
        return 64 << 20  # conservative floor (v7x per-core VMEM)


def _vmem_limit(needed_bytes, vmem_cap):
    return int(min(max(needed_bytes + (4 << 20), 32 << 20), (vmem_cap * 3) // 4))


def _cost(B, C4, C2, H, W, dbytes):
    n = 4 * B * H * W  # output pixels
    return pl.CostEstimate(
        flops=2 * n * C4 * C2 + 8 * n * C4,
        transcendentals=n,
        bytes_accessed=(n * C4 + n * C2) * dbytes + C2 * C4 * 4 + C2 * 4,
    )


# ---------------------------------------------------------------------------
# shared in-kernel math: LayerNorm (affine folded into weights) + expand
# ---------------------------------------------------------------------------
def _ln_expand(x_c4_s, wg, bf, out_dtype):
    """x_c4_s: (C4, S) tile, channels on sublanes, spatial on lanes."""
    x = x_c4_s.astype(jnp.float32)
    c4 = x.shape[0]
    inv_c4 = 1.0 / c4
    mean = jnp.sum(x, axis=0, keepdims=True) * inv_c4       # (1, S)
    d = x - mean
    var = jnp.sum(d * d, axis=0, keepdims=True) * inv_c4    # two-pass variance
    y = d * jax.lax.rsqrt(var + EPS)                        # (C4, S)
    out = jnp.dot(wg, y.astype(wg.dtype),
                  preferred_element_type=jnp.float32)       # MXU: (C2, S)
    return (out + bf).astype(out_dtype)


# ---------------------------------------------------------------------------
# primary path: fully fused (kernel writes final pixel-shuffled NCHW layout)
# ---------------------------------------------------------------------------
def _fused_kernel(x_ref, wg_ref, bf_ref, o_ref, *, c2, th, w):
    # x_ref: (1, 4, C4, TH*W)    quadrant-major input, flat lane-dense spatial
    # o_ref: (1, C2, 2*TH, 2*W)  final NCHW pixel-shuffled output block
    wg = wg_ref[...]
    bf = bf_ref[...]
    z = [_ln_expand(x_ref[0, q], wg, bf, jnp.float32).reshape(c2, th, w)
         for q in range(4)]  # q = 2*p1 + p2
    # p2 -> lane interleave, p1 -> sublane interleave (stays in VMEM, XLU work)
    top = jnp.stack([z[0], z[1]], axis=-1).reshape(c2, th, 2 * w)
    bot = jnp.stack([z[2], z[3]], axis=-1).reshape(c2, th, 2 * w)
    full = jnp.stack([top, bot], axis=2).reshape(c2, 2 * th, 2 * w)
    o_ref[0] = full.astype(o_ref.dtype)


def _patch_expand_fused(x, wg, bf, tile_budget, vmem_cap):
    B, C, H, W = x.shape
    C4, C2 = C // 4, C // 2
    d = jnp.dtype(x.dtype).itemsize

    # Rows per grid step: smallest TH that keeps the flat input tile lane-dense
    # (TH*W % 128 == 0) and the output sublane tile 8-aligned, then doubled
    # toward the VMEM budget.  TH == H (full extent) is always legal.
    base = 128 // math.gcd(128, W)
    if base > H:
        th = H
    else:
        th = min(H, max(base, 4))
        def _step_bytes(t):  # double-buffered in+out tiles
            return 2 * 4 * (C4 + C2) * t * W * d
        while 2 * th <= H and _step_bytes(2 * th) <= tile_budget:
            th *= 2

    grid = (B, pl.cdiv(H, th))
    x4 = x.reshape(B, 4, C4, H * W)  # free: quadrant = contiguous channel slice
    needed = 2 * 4 * (C4 + C2) * th * W * d + C2 * C4 * 4 + C2 * 4

    return pl.pallas_call(
        functools.partial(_fused_kernel, c2=C2, th=th, w=W),
        out_shape=jax.ShapeDtypeStruct((B, C2, 2 * H, 2 * W), x.dtype),
        grid=grid,
        in_specs=[
            pl.BlockSpec((1, 4, C4, th * W), lambda b, t: (b, 0, 0, t)),
            pl.BlockSpec((C2, C4), lambda b, t: (0, 0)),
            pl.BlockSpec((C2, 1), lambda b, t: (0, 0)),
        ],
        out_specs=pl.BlockSpec((1, C2, 2 * th, 2 * W), lambda b, t: (b, 0, t, 0)),
        compiler_params=pltpu.CompilerParams(
            dimension_semantics=("parallel", "parallel"),
            vmem_limit_bytes=_vmem_limit(needed, vmem_cap),
        ),
        cost_estimate=_cost(B, C4, C2, H, W, d),
    )(x4, wg, bf)


# ---------------------------------------------------------------------------
# fallback path: input-side 2x2 shuffle (one XLA pass) + plain LN+matmul kernel
# ---------------------------------------------------------------------------
def _shuffled_kernel(x_ref, wg_ref, bf_ref, o_ref, *, gb):
    # x_ref: (GB, C4, TS) pre-pixel-shuffled input;  o_ref: (GB, C2, TS)
    wg = wg_ref[...]
    bf = bf_ref[...]
    for g in range(gb):  # static unroll over the batched images in this block
        o_ref[g] = _ln_expand(x_ref[g], wg, bf, o_ref.dtype)


def _patch_expand_input_shuffled(x, wg, bf, tile_budget, vmem_cap):
    B, C, H, W = x.shape
    C4, C2 = C // 4, C // 2
    d = jnp.dtype(x.dtype).itemsize
    S = 4 * H * W

    # Single XLA pass applies the 2x2 pixel shuffle to the *input* (half the
    # traffic of the old output-side transpose).  Kernel output is final NCHW.
    xs = x.reshape(B, 2, 2, C4, H, W)
    xs = jnp.transpose(xs, (0, 3, 4, 1, 5, 2)).reshape(B, C4, S)

    # Lane-dense spatial tile, clamped to the generation-aware VMEM budget.
    row_bytes = 2 * (C4 + C2) * d  # double-buffered in+out bytes per lane
    max_ts = max(128, (tile_budget // row_bytes) // 128 * 128)
    if S <= max_ts:
        ts = S  # full extent is always a legal block dim
    else:
        ts = min(max_ts, max(128, (S // 128) * 128))

    # Batch multiple images per grid step for small feature maps so each step
    # moves >= ~1 MiB (amortizes the ~0.35 us per-step overhead).
    gb = 1
    if ts == S and B > 1:
        per_img = (C4 + C2) * ts * d
        gb = min(B,
                 max(1, -(-(1 << 20) // per_img)),
                 max(1, tile_budget // (2 * per_img)))
        while B % gb:
            gb -= 1

    grid = (pl.cdiv(B, gb), pl.cdiv(S, ts))
    needed = 2 * gb * (C4 + C2) * ts * d + C2 * C4 * 4 + C2 * 4

    out = pl.pallas_call(
        functools.partial(_shuffled_kernel, gb=gb),
        out_shape=jax.ShapeDtypeStruct((B, C2, S), x.dtype),
        grid=grid,
        in_specs=[
            pl.BlockSpec((gb, C4, ts), lambda i, s: (i, 0, s)),
            pl.BlockSpec((C2, C4), lambda i, s: (0, 0)),
            pl.BlockSpec((C2, 1), lambda i, s: (0, 0)),
        ],
        out_specs=pl.BlockSpec((gb, C2, ts), lambda i, s: (i, 0, s)),
        compiler_params=pltpu.CompilerParams(
            dimension_semantics=("parallel", "parallel"),
            vmem_limit_bytes=_vmem_limit(needed, vmem_cap),
        ),
        cost_estimate=_cost(B, C4, C2, H, W, d),
    )(xs, wg, bf)
    return out.reshape(B, C2, 2 * H, 2 * W)


# ---------------------------------------------------------------------------
# public wrapper
# ---------------------------------------------------------------------------
def patch_expand(x, w_expand, gamma, beta, dim_scale=2):
    """
    x:        (B, C, H, W)   NCHW
    w_expand: (C//2, C//4)   PyTorch nn.Linear weight (out, in), bias=False
    gamma:    (C//4,)        LayerNorm weight
    beta:     (C//4,)        LayerNorm bias
    returns:  (B, C//2, 2H, 2W)
    """
    assert dim_scale == 2, "PatchExpand Pallas kernel implements dim_scale == 2"
    B, C, H, W = x.shape
    assert C % 4 == 0, "C must be divisible by 4"
    C4, C2 = C // 4, C // 2
    assert w_expand.shape == (C2, C4)

    # Fold the LayerNorm affine into the expand matmul (exact):
    #   W @ (gamma * xhat + beta) = (W * gamma) @ xhat + (W @ beta)
    mm_dtype = jnp.bfloat16 if x.dtype == jnp.bfloat16 else jnp.float32
    w32 = w_expand.astype(jnp.float32)
    wg = (w32 * gamma.astype(jnp.float32)[None, :]).astype(mm_dtype)
    bf = (w32 @ beta.astype(jnp.float32)).reshape(C2, 1)

    vmem_cap = _vmem_capacity_bytes()
    tile_budget = max(8 << 20, vmem_cap // 4)

    # The fused path relies on in-VMEM stack/reshape interleaves; if Mosaic
    # rejects that relayout for this shape, fall back to the always-lowerable
    # input-shuffled variant (fallback only triggers on eager calls, as here).
    try:
        return _patch_expand_fused(x, wg, bf, tile_budget, vmem_cap)
    except Exception:
        return _patch_expand_input_shuffled(x, wg, bf, tile_budget, vmem_cap)


# ---------------------------------------------------------------------------
# pure-JAX reference mirroring the PyTorch forward
# ---------------------------------------------------------------------------
def _reference(x, w_expand, gamma, beta, dim_scale=2):
    B, C, H, W = x.shape
    p = dim_scale
    C4 = C // 4
    xr = jnp.transpose(x, (0, 2, 3, 1)).reshape(B, H, W, p, p, C4)
    xr = jnp.transpose(xr, (0, 1, 3, 2, 4, 5)).reshape(B, H * p, W * p, C4)
    mean = jnp.mean(xr, axis=-1, keepdims=True)
    var = jnp.mean((xr - mean) ** 2, axis=-1, keepdims=True)
    xn = (xr - mean) / jnp.sqrt(var + EPS) * gamma + beta
    y = jnp.einsum("bhwc,oc->bhwo", xn, w_expand)
    return jnp.transpose(y, (0, 3, 1, 2))


if __name__ == "__main__":
    # Small deterministic example: dim=C=32, input_resolution=(16, 16), dim_scale=2
    B, C, H, W = 2, 32, 16, 16
    C4, C2 = C // 4, C // 2

    key = jax.random.PRNGKey(0)
    kx, kw, kg, kb = jax.random.split(key, 4)
    x = jax.random.normal(kx, (B, C, H, W), dtype=jnp.float32)
    w_expand = 0.1 * jax.random.normal(kw, (C2, C4), dtype=jnp.float32)   # (out, in)
    gamma = 1.0 + 0.05 * jax.random.normal(kg, (C4,), dtype=jnp.float32)  # LN weight
    beta = 0.05 * jax.random.normal(kb, (C4,), dtype=jnp.float32)         # LN bias

    out = jax.block_until_ready(patch_expand(x, w_expand, gamma, beta, dim_scale=2))
    ref = _reference(x, w_expand, gamma, beta, dim_scale=2)

    assert out.shape == (B, C2, 2 * H, 2 * W), out.shape
    assert jnp.allclose(out, ref, atol=1e-4, rtol=1e-4), "mismatch vs reference"

    print("KERNEL_OK")
</pallas_src>

<mosaic_0001>
module attributes {stable_mosaic.version = 11 : i64} {
  func.func @_fused_kernel(%arg0: i32, %arg1: i32, %arg2: memref<1x4x8x256xf32, #tpu.memory_space<vmem>>, %arg3: memref<16x8xf32, #tpu.memory_space<vmem>>, %arg4: memref<16x1xf32, #tpu.memory_space<vmem>>, %arg5: memref<1x16x32x32xf32, #tpu.memory_space<vmem>>) attributes {dimension_semantics = [#tpu.dimension_semantics<parallel>, #tpu.dimension_semantics<parallel>], iteration_bounds = array<i64: 2, 1>, scalar_prefetch = 0 : i64, scratch_operands = 0 : i64, tpu.core_type = #tpu.core_type<tc>, window_params = [{transform_indices = @transform_0, window_bounds = array<i64: 1, 4, 8, 256>}, {pipeline_mode = #tpu.pipeline_mode<synchronous>, transform_indices = @transform_1, window_bounds = array<i64: 16, 8>}, {pipeline_mode = #tpu.pipeline_mode<synchronous>, transform_indices = @transform_2, window_bounds = array<i64: 16, 1>}, {transform_indices = @transform_3, window_bounds = array<i64: 1, 16, 32, 32>}]} {
    %c0 = arith.constant 0 : index
    %c0_0 = arith.constant 0 : index
    %0 = vector.load %arg3[%c0, %c0_0] : memref<16x8xf32, #tpu.memory_space<vmem>>, vector<16x8xf32>
    %c0_1 = arith.constant 0 : index
    %c0_2 = arith.constant 0 : index
    %1 = vector.load %arg4[%c0_1, %c0_2] : memref<16x1xf32, #tpu.memory_space<vmem>>, vector<16x1xf32>
    %c0_3 = arith.constant 0 : index
    %c0_4 = arith.constant 0 : index
    %c0_5 = arith.constant 0 : index
    %c0_6 = arith.constant 0 : index
    %2 = vector.load %arg2[%c0_3, %c0_4, %c0_5, %c0_6] : memref<1x4x8x256xf32, #tpu.memory_space<vmem>>, vector<1x1x8x256xf32>
    %3 = vector.shape_cast %2 : vector<1x1x8x256xf32> to vector<8x256xf32>
    %cst = arith.constant dense<0.000000e+00> : vector<256xf32>
    %4 = vector.multi_reduction <add>, %3, %cst [0] : vector<8x256xf32> to vector<256xf32>
    %5 = vector.shape_cast %4 : vector<256xf32> to vector<1x256xf32>
    %cst_7 = arith.constant 1.250000e-01 : f32
    %6 = vector.broadcast %cst_7 : f32 to vector<1x256xf32>
    %7 = arith.mulf %5, %6 : vector<1x256xf32>
    %8 = vector.broadcast %7 : vector<1x256xf32> to vector<8x256xf32>
    %9 = arith.subf %3, %8 : vector<8x256xf32>
    %10 = arith.mulf %9, %9 : vector<8x256xf32>
    %cst_8 = arith.constant dense<0.000000e+00> : vector<256xf32>
    %11 = vector.multi_reduction <add>, %10, %cst_8 [0] : vector<8x256xf32> to vector<256xf32>
    %12 = vector.shape_cast %11 : vector<256xf32> to vector<1x256xf32>
    %cst_9 = arith.constant 1.250000e-01 : f32
    %13 = vector.broadcast %cst_9 : f32 to vector<1x256xf32>
    %14 = arith.mulf %12, %13 : vector<1x256xf32>
    %cst_10 = arith.constant 9.99999974E-6 : f32
    %15 = vector.broadcast %cst_10 : f32 to vector<1x256xf32>
    %16 = arith.addf %14, %15 : vector<1x256xf32>
    %17 = math.rsqrt %16 : vector<1x256xf32>
    %18 = vector.broadcast %17 : vector<1x256xf32> to vector<8x256xf32>
    %19 = arith.mulf %9, %18 : vector<8x256xf32>
    %cst_11 = arith.constant dense<0.000000e+00> : vector<16x256xf32>
    %20 = tpu.matmul %0, %19, %cst_11 {dimension_numbers = #tpu.dot_dimension_numbers<[1], [0], [0], [1], [0, 0, 1, 1], [], []>} : vector<16x8xf32>, vector<8x256xf32>, vector<16x256xf32> -> vector<16x256xf32>
    %21 = vector.broadcast %1 : vector<16x1xf32> to vector<16x256xf32>
    %22 = arith.addf %20, %21 : vector<16x256xf32>
    %23 = vector.shape_cast %22 : vector<16x256xf32> to vector<16x16x16xf32>
    %c0_12 = arith.constant 0 : index
    %c1 = arith.constant 1 : index
    %c0_13 = arith.constant 0 : index
    %c0_14 = arith.constant 0 : index
    %24 = vector.load %arg2[%c0_12, %c1, %c0_13, %c0_14] : memref<1x4x8x256xf32, #tpu.memory_space<vmem>>, vector<1x1x8x256xf32>
    %25 = vector.shape_cast %24 : vector<1x1x8x256xf32> to vector<8x256xf32>
    %cst_15 = arith.constant dense<0.000000e+00> : vector<256xf32>
    %26 = vector.multi_reduction <add>, %25, %cst_15 [0] : vector<8x256xf32> to vector<256xf32>
    %27 = vector.shape_cast %26 : vector<256xf32> to vector<1x256xf32>
    %cst_16 = arith.constant 1.250000e-01 : f32
    %28 = vector.broadcast %cst_16 : f32 to vector<1x256xf32>
    %29 = arith.mulf %27, %28 : vector<1x256xf32>
    %30 = vector.broadcast %29 : vector<1x256xf32> to vector<8x256xf32>
    %31 = arith.subf %25, %30 : vector<8x256xf32>
    %32 = arith.mulf %31, %31 : vector<8x256xf32>
    %cst_17 = arith.constant dense<0.000000e+00> : vector<256xf32>
    %33 = vector.multi_reduction <add>, %32, %cst_17 [0] : vector<8x256xf32> to vector<256xf32>
    %34 = vector.shape_cast %33 : vector<256xf32> to vector<1x256xf32>
    %cst_18 = arith.constant 1.250000e-01 : f32
    %35 = vector.broadcast %cst_18 : f32 to vector<1x256xf32>
    %36 = arith.mulf %34, %35 : vector<1x256xf32>
    %cst_19 = arith.constant 9.99999974E-6 : f32
    %37 = vector.broadcast %cst_19 : f32 to vector<1x256xf32>
    %38 = arith.addf %36, %37 : vector<1x256xf32>
    %39 = math.rsqrt %38 : vector<1x256xf32>
    %40 = vector.broadcast %39 : vector<1x256xf32> to vector<8x256xf32>
    %41 = arith.mulf %31, %40 : vector<8x256xf32>
    %cst_20 = arith.constant dense<0.000000e+00> : vector<16x256xf32>
    %42 = tpu.matmul %0, %41, %cst_20 {dimension_numbers = #tpu.dot_dimension_numbers<[1], [0], [0], [1], [0, 0, 1, 1], [], []>} : vector<16x8xf32>, vector<8x256xf32>, vector<16x256xf32> -> vector<16x256xf32>
    %43 = vector.broadcast %1 : vector<16x1xf32> to vector<16x256xf32>
    %44 = arith.addf %42, %43 : vector<16x256xf32>
    %45 = vector.shape_cast %44 : vector<16x256xf32> to vector<16x16x16xf32>
    %c0_21 = arith.constant 0 : index
    %c2 = arith.constant 2 : index
    %c0_22 = arith.constant 0 : index
    %c0_23 = arith.constant 0 : index
    %46 = vector.load %arg2[%c0_21, %c2, %c0_22, %c0_23] : memref<1x4x8x256xf32, #tpu.memory_space<vmem>>, vector<1x1x8x256xf32>
    %47 = vector.shape_cast %46 : vector<1x1x8x256xf32> to vector<8x256xf32>
    %cst_24 = arith.constant dense<0.000000e+00> : vector<256xf32>
    %48 = vector.multi_reduction <add>, %47, %cst_24 [0] : vector<8x256xf32> to vector<256xf32>
    %49 = vector.shape_cast %48 : vector<256xf32> to vector<1x256xf32>
    %cst_25 = arith.constant 1.250000e-01 : f32
    %50 = vector.broadcast %cst_25 : f32 to vector<1x256xf32>
    %51 = arith.mulf %49, %50 : vector<1x256xf32>
    %52 = vector.broadcast %51 : vector<1x256xf32> to vector<8x256xf32>
    %53 = arith.subf %47, %52 : vector<8x256xf32>
    %54 = arith.mulf %53, %53 : vector<8x256xf32>
    %cst_26 = arith.constant dense<0.000000e+00> : vector<256xf32>
    %55 = vector.multi_reduction <add>, %54, %cst_26 [0] : vector<8x256xf32> to vector<256xf32>
    %56 = vector.shape_cast %55 : vector<256xf32> to vector<1x256xf32>
    %cst_27 = arith.constant 1.250000e-01 : f32
    %57 = vector.broadcast %cst_27 : f32 to vector<1x256xf32>
    %58 = arith.mulf %56, %57 : vector<1x256xf32>
    %cst_28 = arith.constant 9.99999974E-6 : f32
    %59 = vector.broadcast %cst_28 : f32 to vector<1x256xf32>
    %60 = arith.addf %58, %59 : vector<1x256xf32>
    %61 = math.rsqrt %60 : vector<1x256xf32>
    %62 = vector.broadcast %61 : vector<1x256xf32> to vector<8x256xf32>
    %63 = arith.mulf %53, %62 : vector<8x256xf32>
    %cst_29 = arith.constant dense<0.000000e+00> : vector<16x256xf32>
    %64 = tpu.matmul %0, %63, %cst_29 {dimension_numbers = #tpu.dot_dimension_numbers<[1], [0], [0], [1], [0, 0, 1, 1], [], []>} : vector<16x8xf32>, vector<8x256xf32>, vector<16x256xf32> -> vector<16x256xf32>
    %65 = vector.broadcast %1 : vector<16x1xf32> to vector<16x256xf32>
    %66 = arith.addf %64, %65 : vector<16x256xf32>
    %67 = vector.shape_cast %66 : vector<16x256xf32> to vector<16x16x16xf32>
    %c0_30 = arith.constant 0 : index
    %c3 = arith.constant 3 : index
    %c0_31 = arith.constant 0 : index
    %c0_32 = arith.constant 0 : index
    %68 = vector.load %arg2[%c0_30, %c3, %c0_31, %c0_32] : memref<1x4x8x256xf32, #tpu.memory_space<vmem>>, vector<1x1x8x256xf32>
    %69 = vector.shape_cast %68 : vector<1x1x8x256xf32> to vector<8x256xf32>
    %cst_33 = arith.constant dense<0.000000e+00> : vector<256xf32>
    %70 = vector.multi_reduction <add>, %69, %cst_33 [0] : vector<8x256xf32> to vector<256xf32>
    %71 = vector.shape_cast %70 : vector<256xf32> to vector<1x256xf32>
    %cst_34 = arith.constant 1.250000e-01 : f32
    %72 = vector.broadcast %cst_34 : f32 to vector<1x256xf32>
    %73 = arith.mulf %71, %72 : vector<1x256xf32>
    %74 = vector.broadcast %73 : vector<1x256xf32> to vector<8x256xf32>
    %75 = arith.subf %69, %74 : vector<8x256xf32>
    %76 = arith.mulf %75, %75 : vector<8x256xf32>
    %cst_35 = arith.constant dense<0.000000e+00> : vector<256xf32>
    %77 = vector.multi_reduction <add>, %76, %cst_35 [0] : vector<8x256xf32> to vector<256xf32>
    %78 = vector.shape_cast %77 : vector<256xf32> to vector<1x256xf32>
    %cst_36 = arith.constant 1.250000e-01 : f32
    %79 = vector.broadcast %cst_36 : f32 to vector<1x256xf32>
    %80 = arith.mulf %78, %79 : vector<1x256xf32>
    %cst_37 = arith.constant 9.99999974E-6 : f32
    %81 = vector.broadcast %cst_37 : f32 to vector<1x256xf32>
    %82 = arith.addf %80, %81 : vector<1x256xf32>
    %83 = math.rsqrt %82 : vector<1x256xf32>
    %84 = vector.broadcast %83 : vector<1x256xf32> to vector<8x256xf32>
    %85 = arith.mulf %75, %84 : vector<8x256xf32>
    %cst_38 = arith.constant dense<0.000000e+00> : vector<16x256xf32>
    %86 = tpu.matmul %0, %85, %cst_38 {dimension_numbers = #tpu.dot_dimension_numbers<[1], [0], [0], [1], [0, 0, 1, 1], [], []>} : vector<16x8xf32>, vector<8x256xf32>, vector<16x256xf32> -> vector<16x256xf32>
    %87 = vector.broadcast %1 : vector<16x1xf32> to vector<16x256xf32>
    %88 = arith.addf %86, %87 : vector<16x256xf32>
    %89 = vector.shape_cast %88 : vector<16x256xf32> to vector<16x16x16xf32>
    %90 = vector.shape_cast %23 : vector<16x16x16xf32> to vector<16x16x16x1xf32>
    %91 = vector.shape_cast %45 : vector<16x16x16xf32> to vector<16x16x16x1xf32>
    %92 = tpu.concatenate %90, %91 in 3 : vector<16x16x16x1xf32>, vector<16x16x16x1xf32> -> vector<16x16x16x2xf32>
    %93 = vector.shape_cast %92 : vector<16x16x16x2xf32> to vector<16x16x32xf32>
    %94 = vector.shape_cast %67 : vector<16x16x16xf32> to vector<16x16x16x1xf32>
    %95 = vector.shape_cast %89 : vector<16x16x16xf32> to vector<16x16x16x1xf32>
    %96 = tpu.concatenate %94, %95 in 3 : vector<16x16x16x1xf32>, vector<16x16x16x1xf32> -> vector<16x16x16x2xf32>
    %97 = vector.shape_cast %96 : vector<16x16x16x2xf32> to vector<16x16x32xf32>
    %98 = vector.shape_cast %93 : vector<16x16x32xf32> to vector<16x16x1x32xf32>
    %99 = vector.shape_cast %97 : vector<16x16x32xf32> to vector<16x16x1x32xf32>
    %100 = tpu.concatenate %98, %99 in 2 : vector<16x16x1x32xf32>, vector<16x16x1x32xf32> -> vector<16x16x2x32xf32>
    %101 = vector.shape_cast %100 : vector<16x16x2x32xf32> to vector<16x32x32xf32>
    %c0_39 = arith.constant 0 : index
    %c0_40 = arith.constant 0 : index
    %c0_41 = arith.constant 0 : index
    %c0_42 = arith.constant 0 : index
    %102 = vector.load %arg5[%c0_39, %c0_40, %c0_41, %c0_42] : memref<1x16x32x32xf32, #tpu.memory_space<vmem>>, vector<1x16x32x32xf32>
    %103 = vector.shape_cast %102 : vector<1x16x32x32xf32> to vector<16x32x32xf32>
    %104 = vector.shape_cast %101 : vector<16x32x32xf32> to vector<1x16x32x32xf32>
    tpu.vector_store %arg5[%c0_39, %c0_40, %c0_41, %c0_42], %104 {strides = array<i32>} : memref<1x16x32x32xf32, #tpu.memory_space<vmem>>, vector<1x16x32x32xf32>,
    return
  }
  func.func @transform_0(%arg0: i32, %arg1: i32) -> (i32, i32, i32, i32) {
    %c0_i32 = arith.constant 0 : i32
    %c0_i32_0 = arith.constant 0 : i32
    %c0_i32_1 = arith.constant 0 : i32
    return %arg0, %c0_i32, %c0_i32_0, %arg1 : i32, i32, i32, i32
  }
  func.func @transform_1(%arg0: i32, %arg1: i32) -> (i32, i32) {
    %c0_i32 = arith.constant 0 : i32
    %c0_i32_0 = arith.constant 0 : i32
    %c0_i32_1 = arith.constant 0 : i32
    return %c0_i32, %c0_i32_0 : i32, i32
  }
  func.func @transform_2(%arg0: i32, %arg1: i32) -> (i32, i32) {
    %c0_i32 = arith.constant 0 : i32
    %c0_i32_0 = arith.constant 0 : i32
    %c0_i32_1 = arith.constant 0 : i32
    return %c0_i32, %c0_i32_0 : i32, i32
  }
  func.func @transform_3(%arg0: i32, %arg1: i32) -> (i32, i32, i32, i32) {
    %c0_i32 = arith.constant 0 : i32
    %c0_i32_0 = arith.constant 0 : i32
    %c0_i32_1 = arith.constant 0 : i32
    return %arg0, %c0_i32, %arg1, %c0_i32_0 : i32, i32, i32, i32
  }
}

module attributes {stable_mosaic.version = 11 : i64} {
  func.func @_shuffled_kernel(%arg0: i32, %arg1: i32, %arg2: memref<2x8x1024xf32, #tpu.memory_space<vmem>>, %arg3: memref<16x8xf32, #tpu.memory_space<vmem>>, %arg4: memref<16x1xf32, #tpu.memory_space<vmem>>, %arg5: memref<2x16x1024xf32, #tpu.memory_space<vmem>>) attributes {dimension_semantics = [#tpu.dimension_semantics<parallel>, #tpu.dimension_semantics<parallel>], iteration_bounds = array<i64: 1, 1>, scalar_prefetch = 0 : i64, scratch_operands = 0 : i64, tpu.core_type = #tpu.core_type<tc>, window_params = [{transform_indices = @transform_0, window_bounds = array<i64: 2, 8, 1024>}, {pipeline_mode = #tpu.pipeline_mode<synchronous>, transform_indices = @transform_1, window_bounds = array<i64: 16, 8>}, {pipeline_mode = #tpu.pipeline_mode<synchronous>, transform_indices = @transform_2, window_bounds = array<i64: 16, 1>}, {transform_indices = @transform_3, window_bounds = array<i64: 2, 16, 1024>}]} {
    %c0 = arith.constant 0 : index
    %c0_0 = arith.constant 0 : index
    %0 = vector.load %arg3[%c0, %c0_0] : memref<16x8xf32, #tpu.memory_space<vmem>>, vector<16x8xf32>
    %c0_1 = arith.constant 0 : index
    %c0_2 = arith.constant 0 : index
    %1 = vector.load %arg4[%c0_1, %c0_2] : memref<16x1xf32, #tpu.memory_space<vmem>>, vector<16x1xf32>
    %c0_3 = arith.constant 0 : index
    %c0_4 = arith.constant 0 : index
    %c0_5 = arith.constant 0 : index
    %2 = vector.load %arg2[%c0_3, %c0_4, %c0_5] : memref<2x8x1024xf32, #tpu.memory_space<vmem>>, vector<1x8x1024xf32>
    %3 = vector.shape_cast %2 : vector<1x8x1024xf32> to vector<8x1024xf32>
    %cst = arith.constant dense<0.000000e+00> : vector<1024xf32>
    %4 = vector.multi_reduction <add>, %3, %cst [0] : vector<8x1024xf32> to vector<1024xf32>
    %5 = vector.shape_cast %4 : vector<1024xf32> to vector<1x1024xf32>
    %cst_6 = arith.constant 1.250000e-01 : f32
    %6 = vector.broadcast %cst_6 : f32 to vector<1x1024xf32>
    %7 = arith.mulf %5, %6 : vector<1x1024xf32>
    %8 = vector.broadcast %7 : vector<1x1024xf32> to vector<8x1024xf32>
    %9 = arith.subf %3, %8 : vector<8x1024xf32>
    %10 = arith.mulf %9, %9 : vector<8x1024xf32>
    %cst_7 = arith.constant dense<0.000000e+00> : vector<1024xf32>
    %11 = vector.multi_reduction <add>, %10, %cst_7 [0] : vector<8x1024xf32> to vector<1024xf32>
    %12 = vector.shape_cast %11 : vector<1024xf32> to vector<1x1024xf32>
    %cst_8 = arith.constant 1.250000e-01 : f32
    %13 = vector.broadcast %cst_8 : f32 to vector<1x1024xf32>
    %14 = arith.mulf %12, %13 : vector<1x1024xf32>
    %cst_9 = arith.constant 9.99999974E-6 : f32
    %15 = vector.broadcast %cst_9 : f32 to vector<1x1024xf32>
    %16 = arith.addf %14, %15 : vector<1x1024xf32>
    %17 = math.rsqrt %16 : vector<1x1024xf32>
    %18 = vector.broadcast %17 : vector<1x1024xf32> to vector<8x1024xf32>
    %19 = arith.mulf %9, %18 : vector<8x1024xf32>
    %cst_10 = arith.constant dense<0.000000e+00> : vector<16x1024xf32>
    %20 = tpu.matmul %0, %19, %cst_10 {dimension_numbers = #tpu.dot_dimension_numbers<[1], [0], [0], [1], [0, 0, 1, 1], [], []>} : vector<16x8xf32>, vector<8x1024xf32>, vector<16x1024xf32> -> vector<16x1024xf32>
    %21 = vector.broadcast %1 : vector<16x1xf32> to vector<16x1024xf32>
    %22 = arith.addf %20, %21 : vector<16x1024xf32>
    %c0_11 = arith.constant 0 : index
    %c0_12 = arith.constant 0 : index
    %c0_13 = arith.constant 0 : index
    %23 = vector.load %arg5[%c0_11, %c0_12, %c0_13] : memref<2x16x1024xf32, #tpu.memory_space<vmem>>, vector<1x16x1024xf32>
    %24 = vector.shape_cast %23 : vector<1x16x1024xf32> to vector<16x1024xf32>
    %25 = vector.shape_cast %22 : vector<16x1024xf32> to vector<1x16x1024xf32>
    tpu.vector_store %arg5[%c0_11, %c0_12, %c0_13], %25 {strides = array<i32>} : memref<2x16x1024xf32, #tpu.memory_space<vmem>>, vector<1x16x1024xf32>,
    %c1 = arith.constant 1 : index
    %c0_14 = arith.constant 0 : index
    %c0_15 = arith.constant 0 : index
    %26 = vector.load %arg2[%c1, %c0_14, %c0_15] : memref<2x8x1024xf32, #tpu.memory_space<vmem>>, vector<1x8x1024xf32>
    %27 = vector.shape_cast %26 : vector<1x8x1024xf32> to vector<8x1024xf32>
    %cst_16 = arith.constant dense<0.000000e+00> : vector<1024xf32>
    %28 = vector.multi_reduction <add>, %27, %cst_16 [0] : vector<8x1024xf32> to vector<1024xf32>
    %29 = vector.shape_cast %28 : vector<1024xf32> to vector<1x1024xf32>
    %cst_17 = arith.constant 1.250000e-01 : f32
    %30 = vector.broadcast %cst_17 : f32 to vector<1x1024xf32>
    %31 = arith.mulf %29, %30 : vector<1x1024xf32>
    %32 = vector.broadcast %31 : vector<1x1024xf32> to vector<8x1024xf32>
    %33 = arith.subf %27, %32 : vector<8x1024xf32>
    %34 = arith.mulf %33, %33 : vector<8x1024xf32>
    %cst_18 = arith.constant dense<0.000000e+00> : vector<1024xf32>
    %35 = vector.multi_reduction <add>, %34, %cst_18 [0] : vector<8x1024xf32> to vector<1024xf32>
    %36 = vector.shape_cast %35 : vector<1024xf32> to vector<1x1024xf32>
    %cst_19 = arith.constant 1.250000e-01 : f32
    %37 = vector.broadcast %cst_19 : f32 to vector<1x1024xf32>
    %38 = arith.mulf %36, %37 : vector<1x1024xf32>
    %cst_20 = arith.constant 9.99999974E-6 : f32
    %39 = vector.broadcast %cst_20 : f32 to vector<1x1024xf32>
    %40 = arith.addf %38, %39 : vector<1x1024xf32>
    %41 = math.rsqrt %40 : vector<1x1024xf32>
    %42 = vector.broadcast %41 : vector<1x1024xf32> to vector<8x1024xf32>
    %43 = arith.mulf %33, %42 : vector<8x1024xf32>
    %cst_21 = arith.constant dense<0.000000e+00> : vector<16x1024xf32>
    %44 = tpu.matmul %0, %43, %cst_21 {dimension_numbers = #tpu.dot_dimension_numbers<[1], [0], [0], [1], [0, 0, 1, 1], [], []>} : vector<16x8xf32>, vector<8x1024xf32>, vector<16x1024xf32> -> vector<16x1024xf32>
    %45 = vector.broadcast %1 : vector<16x1xf32> to vector<16x1024xf32>
    %46 = arith.addf %44, %45 : vector<16x1024xf32>
    %c1_22 = arith.constant 1 : index
    %c0_23 = arith.constant 0 : index
    %c0_24 = arith.constant 0 : index
    %47 = vector.load %arg5[%c1_22, %c0_23, %c0_24] : memref<2x16x1024xf32, #tpu.memory_space<vmem>>, vector<1x16x1024xf32>
    %48 = vector.shape_cast %47 : vector<1x16x1024xf32> to vector<16x1024xf32>
    %49 = vector.shape_cast %46 : vector<16x1024xf32> to vector<1x16x1024xf32>
    tpu.vector_store %arg5[%c1_22, %c0_23, %c0_24], %49 {strides = array<i32>} : memref<2x16x1024xf32, #tpu.memory_space<vmem>>, vector<1x16x1024xf32>,
    return
  }
  func.func @transform_0(%arg0: i32, %arg1: i32) -> (i32, i32, i32) {
    %c0_i32 = arith.constant 0 : i32
    %c0_i32_0 = arith.constant 0 : i32
    return %arg0, %c0_i32, %arg1 : i32, i32, i32
  }
  func.func @transform_1(%arg0: i32, %arg1: i32) -> (i32, i32) {
    %c0_i32 = arith.constant 0 : i32
    %c0_i32_0 = arith.constant 0 : i32
    %c0_i32_1 = arith.constant 0 : i32
    return %c0_i32, %c0_i32_0 : i32, i32
  }
  func.func @transform_2(%arg0: i32, %arg1: i32) -> (i32, i32) {
    %c0_i32 = arith.constant 0 : i32
    %c0_i32_0 = arith.constant 0 : i32
    %c0_i32_1 = arith.constant 0 : i32
    return %c0_i32, %c0_i32_0 : i32, i32
  }
  func.func @transform_3(%arg0: i32, %arg1: i32) -> (i32, i32, i32) {
    %c0_i32 = arith.constant 0 : i32
    %c0_i32_0 = arith.constant 0 : i32
    return %arg0, %c0_i32, %arg1 : i32, i32, i32
  }
}

</mosaic_0001>

<llo_original>
// kernel: tpu_custom_call.1
$region0: #{tpu_custom_call.1}
  #allocation0 [shape = 'u32[]', space=smem, size = 0x4, offset = 0x4, fixed_abs, tag = 'smem constant byte address 0x4 - core index']
  #allocation1 [shape = 'u32[144,128]{1,0:T(1,128)}', space=vmem, size = 0x12000, scoped, tag = 'internal scratch']
  %s0 = inlined_call_operand.hbm [shape: f32[2,8,1024], index: 0, kind: input, shape index: {}]
  %s1 = inlined_call_operand.vmem [shape: f32[16,8], index: 1, kind: input, shape index: {}]
  %s2 = inlined_call_operand.vmem [shape: f32[16,1], index: 2, kind: input, shape index: {}]
  %s3 = inlined_call_operand.hbm [shape: f32[2,16,1024], index: 3, kind: output, shape index: {}]
  %s4 = sld [smem:[#allocation0]]
  $region26: #{tpu_custom_call.1} parent=0
    _
  %s6 = ssub.s32 1, %s4
  %s7 = scalar_select 0, %s6, %s4
  $region1: #{tpu_custom_call.1} parent=0
    #allocation2 [shape = 'u8[65536]{0}', space=vmem, size = 0x10000, scoped, tag = 'input window, operand 0, single buffered']
    #allocation3 [shape = 's32[1]{0}', space=sflag, size = 0x4, scoped, tag = 'scoped memory for tpu_custom_call.1']
    #allocation4 [shape = 's32[1]{0}', space=sflag, size = 0x4, scoped, tag = 'scoped memory for tpu_custom_call.1']
    #allocation5 [shape = 'u8[131072]{0}', space=vmem, size = 0x20000, scoped, tag = 'output window, operand 0, single buffered']
    %8 = vsyncpa [#allocation3], 0
    %9 = vsyncpa [#allocation4], 0
    // Predicated region
    $region2: #{tpu_custom_call.1} parent=1 // pred_check
      _
    $region3: #{tpu_custom_call.1} parent=1 // pred_check_branch
      %11 = sbr.rel (0) target = $region5
    $region4: #{tpu_custom_call.1} parent=1 // pred_region
      %s13 = ssub.s32 2048, 2048
      %14 = vsyncadd [#allocation3], %s13
      %s15 = sshll.u32 [#allocation2], 4
      %s16 = int_to_ptr.vmem [resolvable:$true] %s15
      %21 = dma.hbm_to_vmem [thread:$0]  %s0, 2048, %s16, [#allocation3], 1024, 1024, 64
    $region5: #{tpu_custom_call.1} parent=1 // pred_fallthru
      _
    // Predicated region
    $region6: #{tpu_custom_call.1} parent=1 // pred_check
      _
    $region7: #{tpu_custom_call.1} parent=1 // pred_check_branch
      %23 = sbr.rel (0) target = $region9
    $region8: #{tpu_custom_call.1} parent=1 // pred_region
      _
    $region9: #{tpu_custom_call.1} parent=1 // pred_fallthru
      _
    // Predicated region
    $region10: #{tpu_custom_call.1} parent=1 // pred_check
      _
    $region11: #{tpu_custom_call.1} parent=1 // pred_check_branch
      %25 = sbr.rel (0) target = $region13
    $region12: #{tpu_custom_call.1} parent=1 // pred_region
      _
    $region13: #{tpu_custom_call.1} parent=1 // pred_fallthru
      _
    // Predicated region
    $region14: #{tpu_custom_call.1} parent=1 // pred_check
      _
    $region15: #{tpu_custom_call.1} parent=1 // pred_check_branch
      %27 = sbr.rel (0) target = $region17
    $region16: #{tpu_custom_call.1} parent=1 // pred_region
      %28 = dma.done [#allocation3], 2048
    $region17: #{tpu_custom_call.1} parent=1 // pred_fallthru
      _
    %v29 = vld [vmem:[%s1] sm:$0xff]
    %v30 = vld [vmem:[%s1 + $0x8] sm:$0xff]
    %v31 = vld [vmem:[%s2] sm:$0xff]
    %v32 = vld [vmem:[%s2 + $0x8] sm:$0xff]
    %v33 = vld [vmem:[#allocation2] sm:$0xff]
    %v34 = vld [vmem:[#allocation2 + $0x8] sm:$0xff]
    %v35 = vld [vmem:[#allocation2 + $0x10] sm:$0xff]
    %v36 = vld [vmem:[#allocation2 + $0x18] sm:$0xff]
    %v37 = vld [vmem:[#allocation2 + $0x20] sm:$0xff]
    %v38 = vld [vmem:[#allocation2 + $0x28] sm:$0xff]
    %v39 = vld [vmem:[#allocation2 + $0x30] sm:$0xff]
    %v40 = vld [vmem:[#allocation2 + $0x38] sm:$0xff]
    %v41 = vrot.slane %v33, 4
    %v42 = vadd.f32 %v33, %v41
    %v43 = vrot.slane %v42, 2
    %v44 = vadd.f32 %v42, %v43
    %v45 = vrot.slane %v44, 1
    %v46 = vadd.f32 %v44, %v45
    %v47 = vrot.slane %v34, 4
    %v48 = vadd.f32 %v34, %v47
    %v49 = vrot.slane %v48, 2
    %v50 = vadd.f32 %v48, %v49
    %v51 = vrot.slane %v50, 1
    %v52 = vadd.f32 %v50, %v51
    %v53 = vrot.slane %v35, 4
    %v54 = vadd.f32 %v35, %v53
    %v55 = vrot.slane %v54, 2
    %v56 = vadd.f32 %v54, %v55
    %v57 = vrot.slane %v56, 1
    %v58 = vadd.f32 %v56, %v57
    %v59 = vrot.slane %v36, 4
    %v60 = vadd.f32 %v36, %v59
    %v61 = vrot.slane %v60, 2
    %v62 = vadd.f32 %v60, %v61
    %v63 = vrot.slane %v62, 1
    %v64 = vadd.f32 %v62, %v63
    %v65 = vrot.slane %v37, 4
    %v66 = vadd.f32 %v37, %v65
    %v67 = vrot.slane %v66, 2
    %v68 = vadd.f32 %v66, %v67
    %v69 = vrot.slane %v68, 1
    %v70 = vadd.f32 %v68, %v69
    %v71 = vrot.slane %v38, 4
    %v72 = vadd.f32 %v38, %v71
    %v73 = vrot.slane %v72, 2
    %v74 = vadd.f32 %v72, %v73
    %v75 = vrot.slane %v74, 1
    %v76 = vadd.f32 %v74, %v75
    %v77 = vrot.slane %v39, 4
    %v78 = vadd.f32 %v39, %v77
    %v79 = vrot.slane %v78, 2
    %v80 = vadd.f32 %v78, %v79
    %v81 = vrot.slane %v80, 1
    %v82 = vadd.f32 %v80, %v81
    %v83 = vrot.slane %v40, 4
    %v84 = vadd.f32 %v40, %v83
    %v85 = vrot.slane %v84, 2
    %v86 = vadd.f32 %v84, %v85
    %v87 = vrot.slane %v86, 1
    %v88 = vadd.f32 %v86, %v87
    %v89 = vmul.f32 %v46, 0.125
    %v90 = vmul.f32 %v52, 0.125
    %v91 = vmul.f32 %v58, 0.125
    %v92 = vmul.f32 %v64, 0.125
    %v93 = vmul.f32 %v70, 0.125
    %v94 = vmul.f32 %v76, 0.125
    %v95 = vmul.f32 %v82, 0.125
    %v96 = vmul.f32 %v88, 0.125
    %v97 = vsub.f32 %v33, %v89
    %v98 = vsub.f32 %v34, %v90
    %v99 = vsub.f32 %v35, %v91
    %v100 = vsub.f32 %v36, %v92
    %v101 = vsub.f32 %v37, %v93
    %v102 = vsub.f32 %v38, %v94
    %v103 = vsub.f32 %v39, %v95
    %v104 = vsub.f32 %v40, %v96
    %v105 = vmul.f32 %v97, %v97
    %v106 = vmul.f32 %v98, %v98
    %v107 = vmul.f32 %v99, %v99
    %v108 = vmul.f32 %v100, %v100
    %v109 = vmul.f32 %v101, %v101
    %v110 = vmul.f32 %v102, %v102
    %v111 = vmul.f32 %v103, %v103
    %v112 = vmul.f32 %v104, %v104
    %v113 = vrot.slane %v105, 4
    %v114 = vadd.f32 %v105, %v113
    %v115 = vrot.slane %v114, 2
    %v116 = vadd.f32 %v114, %v115
    %v117 = vrot.slane %v116, 1
    %v118 = vadd.f32 %v116, %v117
    %v119 = vrot.slane %v106, 4
    %v120 = vadd.f32 %v106, %v119
    %v121 = vrot.slane %v120, 2
    %v122 = vadd.f32 %v120, %v121
    %v123 = vrot.slane %v122, 1
    %v124 = vadd.f32 %v122, %v123
    %v125 = vrot.slane %v107, 4
    %v126 = vadd.f32 %v107, %v125
    %v127 = vrot.slane %v126, 2
    %v128 = vadd.f32 %v126, %v127
    %v129 = vrot.slane %v128, 1
    %v130 = vadd.f32 %v128, %v129
    %v131 = vrot.slane %v108, 4
    %v132 = vadd.f32 %v108, %v131
    %v133 = vrot.slane %v132, 2
    %v134 = vadd.f32 %v132, %v133
    %v135 = vrot.slane %v134, 1
    %v136 = vadd.f32 %v134, %v135
    %v137 = vrot.slane %v109, 4
    %v138 = vadd.f32 %v109, %v137
    %v139 = vrot.slane %v138, 2
    %v140 = vadd.f32 %v138, %v139
    %v141 = vrot.slane %v140, 1
    %v142 = vadd.f32 %v140, %v141
    %v143 = vrot.slane %v110, 4
    %v144 = vadd.f32 %v110, %v143
    %v145 = vrot.slane %v144, 2
    %v146 = vadd.f32 %v144, %v145
    %v147 = vrot.slane %v146, 1
    %v148 = vadd.f32 %v146, %v147
    %v149 = vrot.slane %v111, 4
    %v150 = vadd.f32 %v111, %v149
    %v151 = vrot.slane %v150, 2
    %v152 = vadd.f32 %v150, %v151
    %v153 = vrot.slane %v152, 1
    %v154 = vadd.f32 %v152, %v153
    %v155 = vrot.slane %v112, 4
    %v156 = vadd.f32 %v112, %v155
    %v157 = vrot.slane %v156, 2
    %v158 = vadd.f32 %v156, %v157
    %v159 = vrot.slane %v158, 1
    %v160 = vadd.f32 %v158, %v159
    %v161 = vmul.f32 %v118, 0.125
    %v162 = vmul.f32 %v124, 0.125
    %v163 = vmul.f32 %v130, 0.125
    %v164 = vmul.f32 %v136, 0.125
    %v165 = vmul.f32 %v142, 0.125
    %v166 = vmul.f32 %v148, 0.125
    %v167 = vmul.f32 %v154, 0.125
    %v168 = vmul.f32 %v160, 0.125
    %v169 = vadd.f32 %v161, 1e-05
    %v170 = vadd.f32 %v162, 1e-05
    %v171 = vadd.f32 %v163, 1e-05
    %v172 = vadd.f32 %v164, 1e-05
    %v173 = vadd.f32 %v165, 1e-05
    %v174 = vadd.f32 %v166, 1e-05
    %v175 = vadd.f32 %v167, 1e-05
    %v176 = vadd.f32 %v168, 1e-05
    %v177 = vrsqrt.pop %v169
    %v178 = vrsqrt.pop %v170
    %v179 = vrsqrt.pop %v171
    %v180 = vrsqrt.pop %v172
    %v181 = vrsqrt.pop %v173
    %v182 = vrsqrt.pop %v174
    %v183 = vrsqrt.pop %v175
    %v184 = vrsqrt.pop %v176
    %v185 = vmul.f32 %v97, %v177
    %v186 = vmul.f32 %v98, %v178
    %v187 = vmul.f32 %v99, %v179
    %v188 = vmul.f32 %v100, %v180
    %v189 = vmul.f32 %v101, %v181
    %v190 = vmul.f32 %v102, %v182
    %v191 = vmul.f32 %v103, %v183
    %v192 = vmul.f32 %v104, %v184
    %194 = vset.pattern.permute.xlu0 0
    %195 = vperm.xlu0 %194, %v31
    %v196 = vpop.permute.xlu0 %195
    %199 = vset.pattern.permute.xlu0 0
    %200 = vperm.xlu0 %199, %v32
    %v201 = vpop.permute.xlu0 %200
    %vm203 = vcmask 64512
    %v205 = vsel %vm203, %v29, 0
    %v208 = vsel %vm203, %v30, 0
    %210 = vmatprep.subr.mxu0 %v186
    %211 = vmatpush1.msra.mxu0 %v185
    %212 = vmatprep.subr.mxu0 0.0
    %213 = vmatpush1.msra.mxu0 0.0
    %214 = vmatprep.subr.mxu0 0.0
    %215 = vmatpush1.msra.mxu0 0.0
    %216 = vmatprep.subr.mxu0 0.0
    %217 = vmatpush1.msra.mxu0 0.0
    %218 = vmatprep.subr.mxu0 0.0
    %219 = vmatpush1.msra.mxu0 0.0
    %220 = vmatprep.subr.mxu0 0.0
    %221 = vmatpush1.msra.mxu0 0.0
    %222 = vmatprep.subr.mxu0 0.0
    %223 = vmatpush1.msra.mxu0 0.0
    %224 = vmatprep.subr.mxu0 0.0
    %225 = vmatpush1.msra.mxu0 0.0
    %226 = vmatprep.subr.mxu0 0.0
    %227 = vmatpush1.msra.mxu0 0.0
    %228 = vmatprep.subr.mxu0 0.0
    %229 = vmatpush1.msra.mxu0 0.0
    %230 = vmatprep.subr.mxu0 0.0
    %231 = vmatpush1.msra.mxu0 0.0
    %232 = vmatprep.subr.mxu0 0.0
    %233 = vmatpush1.msra.mxu0 0.0
    %234 = vmatprep.subr.mxu0 0.0
    %235 = vmatpush1.msra.mxu0 0.0
    %236 = vmatprep.subr.mxu0 0.0
    %237 = vmatpush1.msra.mxu0 0.0
    %238 = vmatprep.subr.mxu0 0.0
    %239 = vmatpush1.msra.mxu0 0.0
    %240 = vmatprep.subr.mxu0 0.0
    %241 = vmatpush1.msra.mxu0 0.0
    %242 = vmatprep.subr.mxu0 0.0
    %243 = vmatpush1.msra.mxu0 0.0
    %244 = vmatprep.subr.mxu0 0.0
    %245 = vmatpush1.msra.mxu0 0.0
    %246 = vmatprep.subr.mxu0 0.0
    %247 = vmatpush1.msra.mxu0 0.0
    %248 = vmatprep.subr.mxu0 0.0
    %249 = vmatpush1.msra.mxu0 0.0
    %250 = vmatprep.subr.mxu0 0.0
    %251 = vmatpush1.msra.mxu0 0.0
    %252 = vmatprep.subr.mxu0 0.0
    %253 = vmatpush1.msra.mxu0 0.0
    %254 = vmatprep.subr.mxu0 0.0
    %255 = vmatpush1.msra.mxu0 0.0
    %256 = vmatprep.subr.mxu0 0.0
    %257 = vmatpush1.msra.mxu0 0.0
    %258 = vmatprep.subr.mxu0 0.0
    %259 = vmatpush1.msra.mxu0 0.0
    %260 = vmatprep.subr.mxu0 0.0
    %261 = vmatpush1.msra.mxu0 0.0
    %262 = vmatprep.subr.mxu0 0.0
    %263 = vmatpush1.msra.mxu0 0.0
    %264 = vmatprep.subr.mxu0 0.0
    %265 = vmatpush1.msra.mxu0 0.0
    %266 = vmatprep.subr.mxu0 0.0
    %267 = vmatpush1.msra.mxu0 0.0
    %268 = vmatprep.subr.mxu0 0.0
    %269 = vmatpush1.msra.mxu0 0.0
    %270 = vmatprep.subr.mxu0 0.0
    %271 = vmatpush1.msra.mxu0 0.0
    %272 = vmatprep.subr.mxu0 0.0
    %273 = vmatpush1.msra.mxu0 0.0
    %274 = vmatprep.mubr.f32.mxu0 0.0
    %275 = vmatmul.mubr.f32.gmra.mrb[0].mxu0 %v205
    %v276 = vpop.f32.mrb[0].mxu0
    %v277 = vadd.f32 %v196, %v276
    %v278 = vpop.f32.mrb[0].mxu0
    %v279 = vadd.f32 %v196, %v278
    %280 = vmatprep.mubr.f32.mxu0 0.0
    %281 = vmatmul.mubr.f32.gmra.mrb[0].mxu0 %v208
    %v282 = vpop.f32.mrb[0].mxu0
    %v283 = vadd.f32 %v201, %v282
    %v284 = vpop.f32.mrb[0].mxu0
    %v285 = vadd.f32 %v201, %v284
    %286 = vdwg.mxu0
    %287 = vmatprep.subr.mxu0 %v188
    %288 = vmatpush1.msra.mxu0 %v187
    %289 = vmatprep.subr.mxu0 0.0
    %290 = vmatpush1.msra.mxu0 0.0
    %291 = vmatprep.subr.mxu0 0.0
    %292 = vmatpush1.msra.mxu0 0.0
    %293 = vmatprep.subr.mxu0 0.0
    %294 = vmatpush1.msra.mxu0 0.0
    %295 = vmatprep.subr.mxu0 0.0
    %296 = vmatpush1.msra.mxu0 0.0
    %297 = vmatprep.subr.mxu0 0.0
    %298 = vmatpush1.msra.mxu0 0.0
    %299 = vmatprep.subr.mxu0 0.0
    %300 = vmatpush1.msra.mxu0 0.0
    %301 = vmatprep.subr.mxu0 0.0
    %302 = vmatpush1.msra.mxu0 0.0
    %303 = vmatprep.subr.mxu0 0.0
    %304 = vmatpush1.msra.mxu0 0.0
    %305 = vmatprep.subr.mxu0 0.0
    %306 = vmatpush1.msra.mxu0 0.0
    %307 = vmatprep.subr.mxu0 0.0
    %308 = vmatpush1.msra.mxu0 0.0
    %309 = vmatprep.subr.mxu0 0.0
    %310 = vmatpush1.msra.mxu0 0.0
    %311 = vmatprep.subr.mxu0 0.0
    %312 = vmatpush1.msra.mxu0 0.0
    %313 = vmatprep.subr.mxu0 0.0
    %314 = vmatpush1.msra.mxu0 0.0
    %315 = vmatprep.subr.mxu0 0.0
    %316 = vmatpush1.msra.mxu0 0.0
    %317 = vmatprep.subr.mxu0 0.0
    %318 = vmatpush1.msra.mxu0 0.0
    %319 = vmatprep.subr.mxu0 0.0
    %320 = vmatpush1.msra.mxu0 0.0
    %321 = vmatprep.subr.mxu0 0.0
    %322 = vmatpush1.msra.mxu0 0.0
    %323 = vmatprep.subr.mxu0 0.0
    %324 = vmatpush1.msra.mxu0 0.0
    %325 = vmatprep.subr.mxu0 0.0
    %326 = vmatpush1.msra.mxu0 0.0
    %327 = vmatprep.subr.mxu0 0.0
    %328 = vmatpush1.msra.mxu0 0.0
    %329 = vmatprep.subr.mxu0 0.0
    %330 = vmatpush1.msra.mxu0 0.0
    %331 = vmatprep.subr.mxu0 0.0
    %332 = vmatpush1.msra.mxu0 0.0
    %333 = vmatprep.subr.mxu0 0.0
    %334 = vmatpush1.msra.mxu0 0.0
    %335 = vmatprep.subr.mxu0 0.0
    %336 = vmatpush1.msra.mxu0 0.0
    %337 = vmatprep.subr.mxu0 0.0
    %338 = vmatpush1.msra.mxu0 0.0
    %339 = vmatprep.subr.mxu0 0.0
    %340 = vmatpush1.msra.mxu0 0.0
    %341 = vmatprep.subr.mxu0 0.0
    %342 = vmatpush1.msra.mxu0 0.0
    %343 = vmatprep.subr.mxu0 0.0
    %344 = vmatpush1.msra.mxu0 0.0
    %345 = vmatprep.subr.mxu0 0.0
    %346 = vmatpush1.msra.mxu0 0.0
    %347 = vmatprep.subr.mxu0 0.0
    %348 = vmatpush1.msra.mxu0 0.0
    %349 = vmatprep.subr.mxu0 0.0
    %350 = vmatpush1.msra.mxu0 0.0
    %351 = vmatprep.mubr.f32.mxu0 0.0
    %352 = vmatmul.mubr.f32.gmra.mrb[0].mxu0 %v205
    %v353 = vpop.f32.mrb[0].mxu0
    %v354 = vadd.f32 %v196, %v353
    %v355 = vpop.f32.mrb[0].mxu0
    %v356 = vadd.f32 %v196, %v355
    %357 = vmatprep.mubr.f32.mxu0 0.0
    %358 = vmatmul.mubr.f32.gmra.mrb[0].mxu0 %v208
    %v359 = vpop.f32.mrb[0].mxu0
    %v360 = vadd.f32 %v201, %v359
    %v361 = vpop.f32.mrb[0].mxu0
    %v362 = vadd.f32 %v201, %v361
    %363 = vdwg.mxu0
    %364 = vmatprep.subr.mxu0 %v190
    %365 = vmatpush1.msra.mxu0 %v189
    %366 = vmatprep.subr.mxu0 0.0
    %367 = vmatpush1.msra.mxu0 0.0
    %368 = vmatprep.subr.mxu0 0.0
    %369 = vmatpush1.msra.mxu0 0.0
    %370 = vmatprep.subr.mxu0 0.0
    %371 = vmatpush1.msra.mxu0 0.0
    %372 = vmatprep.subr.mxu0 0.0
    %373 = vmatpush1.msra.mxu0 0.0
    %374 = vmatprep.subr.mxu0 0.0
    %375 = vmatpush1.msra.mxu0 0.0
    %376 = vmatprep.subr.mxu0 0.0
    %377 = vmatpush1.msra.mxu0 0.0
    %378 = vmatprep.subr.mxu0 0.0
    %379 = vmatpush1.msra.mxu0 0.0
    %380 = vmatprep.subr.mxu0 0.0
    %381 = vmatpush1.msra.mxu0 0.0
    %382 = vmatprep.subr.mxu0 0.0
    %383 = vmatpush1.msra.mxu0 0.0
    %384 = vmatprep.subr.mxu0 0.0
    %385 = vmatpush1.msra.mxu0 0.0
    %386 = vmatprep.subr.mxu0 0.0
    %387 = vmatpush1.msra.mxu0 0.0
    %388 = vmatprep.subr.mxu0 0.0
    %389 = vmatpush1.msra.mxu0 0.0
    %390 = vmatprep.subr.mxu0 0.0
    %391 = vmatpush1.msra.mxu0 0.0
    %392 = vmatprep.subr.mxu0 0.0
    %393 = vmatpush1.msra.mxu0 0.0
    %394 = vmatprep.subr.mxu0 0.0
    %395 = vmatpush1.msra.mxu0 0.0
    %396 = vmatprep.subr.mxu0 0.0
    %397 = vmatpush1.msra.mxu0 0.0
    %398 = vmatprep.subr.mxu0 0.0
    %399 = vmatpush1.msra.mxu0 0.0
    %400 = vmatprep.subr.mxu0 0.0
    %401 = vmatpush1.msra.mxu0 0.0
    %402 = vmatprep.subr.mxu0 0.0
    %403 = vmatpush1.msra.mxu0 0.0
    %404 = vmatprep.subr.mxu0 0.0
    %405 = vmatpush1.msra.mxu0 0.0
    %406 = vmatprep.subr.mxu0 0.0
    %407 = vmatpush1.msra.mxu0 0.0
    %408 = vmatprep.subr.mxu0 0.0
    %409 = vmatpush1.msra.mxu0 0.0
    %410 = vmatprep.subr.mxu0 0.0
    %411 = vmatpush1.msra.mxu0 0.0
    %412 = vmatprep.subr.mxu0 0.0
    %413 = vmatpush1.msra.mxu0 0.0
    %414 = vmatprep.subr.mxu0 0.0
    %415 = vmatpush1.msra.mxu0 0.0
    %416 = vmatprep.subr.mxu0 0.0
    %417 = vmatpush1.msra.mxu0 0.0
    %418 = vmatprep.subr.mxu0 0.0
    %419 = vmatpush1.msra.mxu0 0.0
    %420 = vmatprep.subr.mxu0 0.0
    %421 = vmatpush1.msra.mxu0 0.0
    %422 = vmatprep.subr.mxu0 0.0
    %423 = vmatpush1.msra.mxu0 0.0
    %424 = vmatprep.subr.mxu0 0.0
    %425 = vmatpush1.msra.mxu0 0.0
    %426 = vmatprep.subr.mxu0 0.0
    %427 = vmatpush1.msra.mxu0 0.0
    %428 = vmatprep.mubr.f32.mxu0 0.0
    %429 = vmatmul.mubr.f32.gmra.mrb[0].mxu0 %v205
    %v430 = vpop.f32.mrb[0].mxu0
    %v431 = vadd.f32 %v196, %v430
    %v432 = vpop.f32.mrb[0].mxu0
    %v433 = vadd.f32 %v196, %v432
    %434 = vmatprep.mubr.f32.mxu0 0.0
    %435 = vmatmul.mubr.f32.gmra.mrb[0].mxu0 %v208
    %v436 = vpop.f32.mrb[0].mxu0
    %v437 = vadd.f32 %v201, %v436
    %v438 = vpop.f32.mrb[0].mxu0
    %v439 = vadd.f32 %v201, %v438
    %440 = vdwg.mxu0
    %441 = vmatprep.subr.mxu0 %v192
    %442 = vmatpush1.msra.mxu0 %v191
    %443 = vmatprep.subr.mxu0 0.0
    %444 = vmatpush1.msra.mxu0 0.0
    %445 = vmatprep.subr.mxu0 0.0
    %446 = vmatpush1.msra.mxu0 0.0
    %447 = vmatprep.subr.mxu0 0.0
    %448 = vmatpush1.msra.mxu0 0.0
    %449 = vmatprep.subr.mxu0 0.0
    %450 = vmatpush1.msra.mxu0 0.0
    %451 = vmatprep.subr.mxu0 0.0
    %452 = vmatpush1.msra.mxu0 0.0
    %453 = vmatprep.subr.mxu0 0.0
    %454 = vmatpush1.msra.mxu0 0.0
    %455 = vmatprep.subr.mxu0 0.0
    %456 = vmatpush1.msra.mxu0 0.0
    %457 = vmatprep.subr.mxu0 0.0
    %458 = vmatpush1.msra.mxu0 0.0
    %459 = vmatprep.subr.mxu0 0.0
    %460 = vmatpush1.msra.mxu0 0.0
    %461 = vmatprep.subr.mxu0 0.0
    %462 = vmatpush1.msra.mxu0 0.0
    %463 = vmatprep.subr.mxu0 0.0
    %464 = vmatpush1.msra.mxu0 0.0
    %465 = vmatprep.subr.mxu0 0.0
    %466 = vmatpush1.msra.mxu0 0.0
    %467 = vmatprep.subr.mxu0 0.0
    %468 = vmatpush1.msra.mxu0 0.0
    %469 = vmatprep.subr.mxu0 0.0
    %470 = vmatpush1.msra.mxu0 0.0
    %471 = vmatprep.subr.mxu0 0.0
    %472 = vmatpush1.msra.mxu0 0.0
    %473 = vmatprep.subr.mxu0 0.0
    %474 = vmatpush1.msra.mxu0 0.0
    %475 = vmatprep.subr.mxu0 0.0
    %476 = vmatpush1.msra.mxu0 0.0
    %477 = vmatprep.subr.mxu0 0.0
    %478 = vmatpush1.msra.mxu0 0.0
    %479 = vmatprep.subr.mxu0 0.0
    %480 = vmatpush1.msra.mxu0 0.0
    %481 = vmatprep.subr.mxu0 0.0
    %482 = vmatpush1.msra.mxu0 0.0
    %483 = vmatprep.subr.mxu0 0.0
    %484 = vmatpush1.msra.mxu0 0.0
    %485 = vmatprep.subr.mxu0 0.0
    %486 = vmatpush1.msra.mxu0 0.0
    %487 = vmatprep.subr.mxu0 0.0
    %488 = vmatpush1.msra.mxu0 0.0
    %489 = vmatprep.subr.mxu0 0.0
    %490 = vmatpush1.msra.mxu0 0.0
    %491 = vmatprep.subr.mxu0 0.0
    %492 = vmatpush1.msra.mxu0 0.0
    %493 = vmatprep.subr.mxu0 0.0
    %494 = vmatpush1.msra.mxu0 0.0
    %495 = vmatprep.subr.mxu0 0.0
    %496 = vmatpush1.msra.mxu0 0.0
    %497 = vmatprep.subr.mxu0 0.0
    %498 = vmatpush1.msra.mxu0 0.0
    %499 = vmatprep.subr.mxu0 0.0
    %500 = vmatpush1.msra.mxu0 0.0
    %501 = vmatprep.subr.mxu0 0.0
    %502 = vmatpush1.msra.mxu0 0.0
    %503 = vmatprep.subr.mxu0 0.0
    %504 = vmatpush1.msra.mxu0 0.0
    %505 = vmatprep.mubr.f32.mxu0 0.0
    %506 = vmatmul.mubr.f32.gmra.mrb[0].mxu0 %v205
    %v507 = vpop.f32.mrb[0].mxu0
    %v508 = vadd.f32 %v196, %v507
    %v509 = vpop.f32.mrb[0].mxu0
    %v510 = vadd.f32 %v196, %v509
    %511 = vmatprep.mubr.f32.mxu0 0.0
    %512 = vmatmul.mubr.f32.gmra.mrb[0].mxu0 %v208
    %v513 = vpop.f32.mrb[0].mxu0
    %v514 = vadd.f32 %v201, %v513
    %v515 = vpop.f32.mrb[0].mxu0
    %v516 = vadd.f32 %v201, %v515
    %517 = vdwg.mxu0
    %518 = vst [vmem:[#allocation5] sm:$0xff] %v277
    %519 = vst [vmem:[#allocation5 + $0x8] sm:$0xff] %v279
    %520 = vst [vmem:[#allocation5 + $0x10] sm:$0xff] %v354
    %521 = vst [vmem:[#allocation5 + $0x18] sm:$0xff] %v356
    %522 = vst [vmem:[#allocation5 + $0x20] sm:$0xff] %v431
    %523 = vst [vmem:[#allocation5 + $0x28] sm:$0xff] %v433
    %524 = vst [vmem:[#allocation5 + $0x30] sm:$0xff] %v508
    %525 = vst [vmem:[#allocation5 + $0x38] sm:$0xff] %v510
    %526 = vst [vmem:[#allocation5 + $0x40] sm:$0xff] %v283
    %527 = vst [vmem:[#allocation5 + $0x48] sm:$0xff] %v285
    %528 = vst [vmem:[#allocation5 + $0x50] sm:$0xff] %v360
    %529 = vst [vmem:[#allocation5 + $0x58] sm:$0xff] %v362
    %530 = vst [vmem:[#allocation5 + $0x60] sm:$0xff] %v437
    %531 = vst [vmem:[#allocation5 + $0x68] sm:$0xff] %v439
    %532 = vst [vmem:[#allocation5 + $0x70] sm:$0xff] %v514
    %533 = vst [vmem:[#allocation5 + $0x78] sm:$0xff] %v516
    %s534 = scalar_lea.vmem [#allocation2], 64
    %v535 = vld [vmem:[%s534] sm:$0xff]
    %v536 = vld [vmem:[%s534 + $0x8] sm:$0xff]
    %v537 = vld [vmem:[%s534 + $0x10] sm:$0xff]
    %v538 = vld [vmem:[%s534 + $0x18] sm:$0xff]
    %v539 = vld [vmem:[%s534 + $0x20] sm:$0xff]
    %v540 = vld [vmem:[%s534 + $0x28] sm:$0xff]
    %v541 = vld [vmem:[%s534 + $0x30] sm:$0xff]
    %v542 = vld [vmem:[%s534 + $0x38] sm:$0xff]
    %v543 = vrot.slane %v535, 4
    %v544 = vadd.f32 %v535, %v543
    %v545 = vrot.slane %v544, 2
    %v546 = vadd.f32 %v544, %v545
    %v547 = vrot.slane %v546, 1
    %v548 = vadd.f32 %v546, %v547
    %v549 = vrot.slane %v536, 4
    %v550 = vadd.f32 %v536, %v549
    %v551 = vrot.slane %v550, 2
    %v552 = vadd.f32 %v550, %v551
    %v553 = vrot.slane %v552, 1
    %v554 = vadd.f32 %v552, %v553
    %v555 = vrot.slane %v537, 4
    %v556 = vadd.f32 %v537, %v555
    %v557 = vrot.slane %v556, 2
    %v558 = vadd.f32 %v556, %v557
    %v559 = vrot.slane %v558, 1
    %v560 = vadd.f32 %v558, %v559
    %v561 = vrot.slane %v538, 4
    %v562 = vadd.f32 %v538, %v561
    %v563 = vrot.slane %v562, 2
    %v564 = vadd.f32 %v562, %v563
    %v565 = vrot.slane %v564, 1
    %v566 = vadd.f32 %v564, %v565
    %v567 = vrot.slane %v539, 4
    %v568 = vadd.f32 %v539, %v567
    %v569 = vrot.slane %v568, 2
    %v570 = vadd.f32 %v568, %v569
    %v571 = vrot.slane %v570, 1
    %v572 = vadd.f32 %v570, %v571
    %v573 = vrot.slane %v540, 4
    %v574 = vadd.f32 %v540, %v573
    %v575 = vrot.slane %v574, 2
    %v576 = vadd.f32 %v574, %v575
    %v577 = vrot.slane %v576, 1
    %v578 = vadd.f32 %v576, %v577
    %v579 = vrot.slane %v541, 4
    %v580 = vadd.f32 %v541, %v579
    %v581 = vrot.slane %v580, 2
    %v582 = vadd.f32 %v580, %v581
    %v583 = vrot.slane %v582, 1
    %v584 = vadd.f32 %v582, %v583
    %v585 = vrot.slane %v542, 4
    %v586 = vadd.f32 %v542, %v585
    %v587 = vrot.slane %v586, 2
    %v588 = vadd.f32 %v586, %v587
    %v589 = vrot.slane %v588, 1
    %v590 = vadd.f32 %v588, %v589
    %v591 = vmul.f32 %v548, 0.125
    %v592 = vmul.f32 %v554, 0.125
    %v593 = vmul.f32 %v560, 0.125
    %v594 = vmul.f32 %v566, 0.125
    %v595 = vmul.f32 %v572, 0.125
    %v596 = vmul.f32 %v578, 0.125
    %v597 = vmul.f32 %v584, 0.125
    %v598 = vmul.f32 %v590, 0.125
    %v599 = vsub.f32 %v535, %v591
    %v600 = vsub.f32 %v536, %v592
    %v601 = vsub.f32 %v537, %v593
    %v602 = vsub.f32 %v538, %v594
    %v603 = vsub.f32 %v539, %v595
    %v604 = vsub.f32 %v540, %v596
    %v605 = vsub.f32 %v541, %v597
    %v606 = vsub.f32 %v542, %v598
    %v607 = vmul.f32 %v599, %v599
    %v608 = vmul.f32 %v600, %v600
    %v609 = vmul.f32 %v601, %v601
    %v610 = vmul.f32 %v602, %v602
    %v611 = vmul.f32 %v603, %v603
    %v612 = vmul.f32 %v604, %v604
    %v613 = vmul.f32 %v605, %v605
    %v614 = vmul.f32 %v606, %v606
    %v615 = vrot.slane %v607, 4
    %v616 = vadd.f32 %v607, %v615
    %v617 = vrot.slane %v616, 2
    %v618 = vadd.f32 %v616, %v617
    %v619 = vrot.slane %v618, 1
    %v620 = vadd.f32 %v618, %v619
    %v621 = vrot.slane %v608, 4
    %v622 = vadd.f32 %v608, %v621
    %v623 = vrot.slane %v622, 2
    %v624 = vadd.f32 %v622, %v623
    %v625 = vrot.slane %v624, 1
    %v626 = vadd.f32 %v624, %v625
    %v627 = vrot.slane %v609, 4
    %v628 = vadd.f32 %v609, %v627
    %v629 = vrot.slane %v628, 2
    %v630 = vadd.f32 %v628, %v629
    %v631 = vrot.slane %v630, 1
    %v632 = vadd.f32 %v630, %v631
    %v633 = vrot.slane %v610, 4
    %v634 = vadd.f32 %v610, %v633
    %v635 = vrot.slane %v634, 2
    %v636 = vadd.f32 %v634, %v635
    %v637 = vrot.slane %v636, 1
    %v638 = vadd.f32 %v636, %v637
    %v639 = vrot.slane %v611, 4
    %v640 = vadd.f32 %v611, %v639
    %v641 = vrot.slane %v640, 2
    %v642 = vadd.f32 %v640, %v641
    %v643 = vrot.slane %v642, 1
    %v644 = vadd.f32 %v642, %v643
    %v645 = vrot.slane %v612, 4
    %v646 = vadd.f32 %v612, %v645
    %v647 = vrot.slane %v646, 2
    %v648 = vadd.f32 %v646, %v647
    %v649 = vrot.slane %v648, 1
    %v650 = vadd.f32 %v648, %v649
    %v651 = vrot.slane %v613, 4
    %v652 = vadd.f32 %v613, %v651
    %v653 = vrot.slane %v652, 2
    %v654 = vadd.f32 %v652, %v653
    %v655 = vrot.slane %v654, 1
    %v656 = vadd.f32 %v654, %v655
    %v657 = vrot.slane %v614, 4
    %v658 = vadd.f32 %v614, %v657
    %v659 = vrot.slane %v658, 2
    %v660 = vadd.f32 %v658, %v659
    %v661 = vrot.slane %v660, 1
    %v662 = vadd.f32 %v660, %v661
    %v663 = vmul.f32 %v620, 0.125
    %v664 = vmul.f32 %v626, 0.125
    %v665 = vmul.f32 %v632, 0.125
    %v666 = vmul.f32 %v638, 0.125
    %v667 = vmul.f32 %v644, 0.125
    %v668 = vmul.f32 %v650, 0.125
    %v669 = vmul.f32 %v656, 0.125
    %v670 = vmul.f32 %v662, 0.125
    %v671 = vadd.f32 %v663, 1e-05
    %v672 = vadd.f32 %v664, 1e-05
    %v673 = vadd.f32 %v665, 1e-05
    %v674 = vadd.f32 %v666, 1e-05
    %v675 = vadd.f32 %v667, 1e-05
    %v676 = vadd.f32 %v668, 1e-05
    %v677 = vadd.f32 %v669, 1e-05
    %v678 = vadd.f32 %v670, 1e-05
    %v679 = vrsqrt.pop %v671
    %v680 = vrsqrt.pop %v672
    %v681 = vrsqrt.pop %v673
    %v682 = vrsqrt.pop %v674
    %v683 = vrsqrt.pop %v675
    %v684 = vrsqrt.pop %v676
    %v685 = vrsqrt.pop %v677
    %v686 = vrsqrt.pop %v678
    %v687 = vmul.f32 %v599, %v679
    %v688 = vmul.f32 %v600, %v680
    %v689 = vmul.f32 %v601, %v681
    %v690 = vmul.f32 %v602, %v682
    %v691 = vmul.f32 %v603, %v683
    %v692 = vmul.f32 %v604, %v684
    %v693 = vmul.f32 %v605, %v685
    %v694 = vmul.f32 %v606, %v686
    %695 = vmatprep.subr.mxu0 %v688
    %696 = vmatpush1.msra.mxu0 %v687
    %697 = vmatprep.subr.mxu0 0.0
    %698 = vmatpush1.msra.mxu0 0.0
    %699 = vmatprep.subr.mxu0 0.0
    %700 = vmatpush1.msra.mxu0 0.0
    %701 = vmatprep.subr.mxu0 0.0
    %702 = vmatpush1.msra.mxu0 0.0
    %703 = vmatprep.subr.mxu0 0.0
    %704 = vmatpush1.msra.mxu0 0.0
    %705 = vmatprep.subr.mxu0 0.0
    %706 = vmatpush1.msra.mxu0 0.0
    %707 = vmatprep.subr.mxu0 0.0
    %708 = vmatpush1.msra.mxu0 0.0
    %709 = vmatprep.subr.mxu0 0.0
    %710 = vmatpush1.msra.mxu0 0.0
    %711 = vmatprep.subr.mxu0 0.0
    %712 = vmatpush1.msra.mxu0 0.0
    %713 = vmatprep.subr.mxu0 0.0
    %714 = vmatpush1.msra.mxu0 0.0
    %715 = vmatprep.subr.mxu0 0.0
    %716 = vmatpush1.msra.mxu0 0.0
    %717 = vmatprep.subr.mxu0 0.0
    %718 = vmatpush1.msra.mxu0 0.0
    %719 = vmatprep.subr.mxu0 0.0
    %720 = vmatpush1.msra.mxu0 0.0
    %721 = vmatprep.subr.mxu0 0.0
    %722 = vmatpush1.msra.mxu0 0.0
    %723 = vmatprep.subr.mxu0 0.0
    %724 = vmatpush1.msra.mxu0 0.0
    %725 = vmatprep.subr.mxu0 0.0
    %726 = vmatpush1.msra.mxu0 0.0
    %727 = vmatprep.subr.mxu0 0.0
    %728 = vmatpush1.msra.mxu0 0.0
    %729 = vmatprep.subr.mxu0 0.0
    %730 = vmatpush1.msra.mxu0 0.0
    %731 = vmatprep.subr.mxu0 0.0
    %732 = vmatpush1.msra.mxu0 0.0
    %733 = vmatprep.subr.mxu0 0.0
    %734 = vmatpush1.msra.mxu0 0.0
    %735 = vmatprep.subr.mxu0 0.0
    %736 = vmatpush1.msra.mxu0 0.0
    %737 = vmatprep.subr.mxu0 0.0
    %738 = vmatpush1.msra.mxu0 0.0
    %739 = vmatprep.subr.mxu0 0.0
    %740 = vmatpush1.msra.mxu0 0.0
    %741 = vmatprep.subr.mxu0 0.0
    %742 = vmatpush1.msra.mxu0 0.0
    %743 = vmatprep.subr.mxu0 0.0
    %744 = vmatpush1.msra.mxu0 0.0
    %745 = vmatprep.subr.mxu0 0.0
    %746 = vmatpush1.msra.mxu0 0.0
    %747 = vmatprep.subr.mxu0 0.0
    %748 = vmatpush1.msra.mxu0 0.0
    %749 = vmatprep.subr.mxu0 0.0
    %750 = vmatpush1.msra.mxu0 0.0
    %751 = vmatprep.subr.mxu0 0.0
    %752 = vmatpush1.msra.mxu0 0.0
    %753 = vmatprep.subr.mxu0 0.0
    %754 = vmatpush1.msra.mxu0 0.0
    %755 = vmatprep.subr.mxu0 0.0
    %756 = vmatpush1.msra.mxu0 0.0
    %757 = vmatprep.subr.mxu0 0.0
    %758 = vmatpush1.msra.mxu0 0.0
    %759 = vmatprep.mubr.f32.mxu0 0.0
    %760 = vmatmul.mubr.f32.gmra.mrb[0].mxu0 %v205
    %v761 = vpop.f32.mrb[0].mxu0
    %v762 = vadd.f32 %v196, %v761
    %v763 = vpop.f32.mrb[0].mxu0
    %v764 = vadd.f32 %v196, %v763
    %765 = vmatprep.mubr.f32.mxu0 0.0
    %766 = vmatmul.mubr.f32.gmra.mrb[0].mxu0 %v208
    %v767 = vpop.f32.mrb[0].mxu0
    %v768 = vadd.f32 %v201, %v767
    %v769 = vpop.f32.mrb[0].mxu0
    %v770 = vadd.f32 %v201, %v769
    %771 = vdwg.mxu0
    %772 = vmatprep.subr.mxu0 %v690
    %773 = vmatpush1.msra.mxu0 %v689
    %774 = vmatprep.subr.mxu0 0.0
    %775 = vmatpush1.msra.mxu0 0.0
    %776 = vmatprep.subr.mxu0 0.0
    %777 = vmatpush1.msra.mxu0 0.0
    %778 = vmatprep.subr.mxu0 0.0
    %779 = vmatpush1.msra.mxu0 0.0
    %780 = vmatprep.subr.mxu0 0.0
    %781 = vmatpush1.msra.mxu0 0.0
    %782 = vmatprep.subr.mxu0 0.0
    %783 = vmatpush1.msra.mxu0 0.0
    %784 = vmatprep.subr.mxu0 0.0
    %785 = vmatpush1.msra.mxu0 0.0
    %786 = vmatprep.subr.mxu0 0.0
    %787 = vmatpush1.msra.mxu0 0.0
    %788 = vmatprep.subr.mxu0 0.0
    %789 = vmatpush1.msra.mxu0 0.0
    %790 = vmatprep.subr.mxu0 0.0
    %791 = vmatpush1.msra.mxu0 0.0
    %792 = vmatprep.subr.mxu0 0.0
    %793 = vmatpush1.msra.mxu0 0.0
    %794 = vmatprep.subr.mxu0 0.0
    %795 = vmatpush1.msra.mxu0 0.0
    %796 = vmatprep.subr.mxu0 0.0
    %797 = vmatpush1.msra.mxu0 0.0
    %798 = vmatprep.subr.mxu0 0.0
    %799 = vmatpush1.msra.mxu0 0.0
    %800 = vmatprep.subr.mxu0 0.0
    %801 = vmatpush1.msra.mxu0 0.0
    %802 = vmatprep.subr.mxu0 0.0
    %803 = vmatpush1.msra.mxu0 0.0
    %804 = vmatprep.subr.mxu0 0.0
    %805 = vmatpush1.msra.mxu0 0.0
    %806 = vmatprep.subr.mxu0 0.0
    %807 = vmatpush1.msra.mxu0 0.0
    %808 = vmatprep.subr.mxu0 0.0
    %809 = vmatpush1.msra.mxu0 0.0
    %810 = vmatprep.subr.mxu0 0.0
    %811 = vmatpush1.msra.mxu0 0.0
    %812 = vmatprep.subr.mxu0 0.0
    %813 = vmatpush1.msra.mxu0 0.0
    %814 = vmatprep.subr.mxu0 0.0
    %815 = vmatpush1.msra.mxu0 0.0
    %816 = vmatprep.subr.mxu0 0.0
    %817 = vmatpush1.msra.mxu0 0.0
    %818 = vmatprep.subr.mxu0 0.0
    %819 = vmatpush1.msra.mxu0 0.0
    %820 = vmatprep.subr.mxu0 0.0
    %821 = vmatpush1.msra.mxu0 0.0
    %822 = vmatprep.subr.mxu0 0.0
    %823 = vmatpush1.msra.mxu0 0.0
    %824 = vmatprep.subr.mxu0 0.0
    %825 = vmatpush1.msra.mxu0 0.0
    %826 = vmatprep.subr.mxu0 0.0
    %827 = vmatpush1.msra.mxu0 0.0
    %828 = vmatprep.subr.mxu0 0.0
    %829 = vmatpush1.msra.mxu0 0.0
    %830 = vmatprep.subr.mxu0 0.0
    %831 = vmatpush1.msra.mxu0 0.0
    %832 = vmatprep.subr.mxu0 0.0
    %833 = vmatpush1.msra.mxu0 0.0
    %834 = vmatprep.subr.mxu0 0.0
    %835 = vmatpush1.msra.mxu0 0.0
    %836 = vmatprep.mubr.f32.mxu0 0.0
    %837 = vmatmul.mubr.f32.gmra.mrb[0].mxu0 %v205
    %v838 = vpop.f32.mrb[0].mxu0
    %v839 = vadd.f32 %v196, %v838
    %v840 = vpop.f32.mrb[0].mxu0
    %v841 = vadd.f32 %v196, %v840
    %842 = vmatprep.mubr.f32.mxu0 0.0
    %843 = vmatmul.mubr.f32.gmra.mrb[0].mxu0 %v208
    %v844 = vpop.f32.mrb[0].mxu0
    %v845 = vadd.f32 %v201, %v844
    %v846 = vpop.f32.mrb[0].mxu0
    %v847 = vadd.f32 %v201, %v846
    %848 = vdwg.mxu0
    %849 = vmatprep.subr.mxu0 %v692
    %850 = vmatpush1.msra.mxu0 %v691
    %851 = vmatprep.subr.mxu0 0.0
    %852 = vmatpush1.msra.mxu0 0.0
    %853 = vmatprep.subr.mxu0 0.0
    %854 = vmatpush1.msra.mxu0 0.0
    %855 = vmatprep.subr.mxu0 0.0
    %856 = vmatpush1.msra.mxu0 0.0
    %857 = vmatprep.subr.mxu0 0.0
    %858 = vmatpush1.msra.mxu0 0.0
    %859 = vmatprep.subr.mxu0 0.0
    %860 = vmatpush1.msra.mxu0 0.0
    %861 = vmatprep.subr.mxu0 0.0
    %862 = vmatpush1.msra.mxu0 0.0
    %863 = vmatprep.subr.mxu0 0.0
    %864 = vmatpush1.msra.mxu0 0.0
    %865 = vmatprep.subr.mxu0 0.0
    %866 = vmatpush1.msra.mxu0 0.0
    %867 = vmatprep.subr.mxu0 0.0
    %868 = vmatpush1.msra.mxu0 0.0
    %869 = vmatprep.subr.mxu0 0.0
    %870 = vmatpush1.msra.mxu0 0.0
    %871 = vmatprep.subr.mxu0 0.0
    %872 = vmatpush1.msra.mxu0 0.0
    %873 = vmatprep.subr.mxu0 0.0
    %874 = vmatpush1.msra.mxu0 0.0
    %875 = vmatprep.subr.mxu0 0.0
    %876 = vmatpush1.msra.mxu0 0.0
    %877 = vmatprep.subr.mxu0 0.0
    %878 = vmatpush1.msra.mxu0 0.0
    %879 = vmatprep.subr.mxu0 0.0
    %880 = vmatpush1.msra.mxu0 0.0
    %881 = vmatprep.subr.mxu0 0.0
    %882 = vmatpush1.msra.mxu0 0.0
    %883 = vmatprep.subr.mxu0 0.0
    %884 = vmatpush1.msra.mxu0 0.0
    %885 = vmatprep.subr.mxu0 0.0
    %886 = vmatpush1.msra.mxu0 0.0
    %887 = vmatprep.subr.mxu0 0.0
    %888 = vmatpush1.msra.mxu0 0.0
    %889 = vmatprep.subr.mxu0 0.0
    %890 = vmatpush1.msra.mxu0 0.0
    %891 = vmatprep.subr.mxu0 0.0
    %892 = vmatpush1.msra.mxu0 0.0
    %893 = vmatprep.subr.mxu0 0.0
    %894 = vmatpush1.msra.mxu0 0.0
    %895 = vmatprep.subr.mxu0 0.0
    %896 = vmatpush1.msra.mxu0 0.0
    %897 = vmatprep.subr.mxu0 0.0
    %898 = vmatpush1.msra.mxu0 0.0
    %899 = vmatprep.subr.mxu0 0.0
    %900 = vmatpush1.msra.mxu0 0.0
    %901 = vmatprep.subr.mxu0 0.0
    %902 = vmatpush1.msra.mxu0 0.0
    %903 = vmatprep.subr.mxu0 0.0
    %904 = vmatpush1.msra.mxu0 0.0
    %905 = vmatprep.subr.mxu0 0.0
    %906 = vmatpush1.msra.mxu0 0.0
    %907 = vmatprep.subr.mxu0 0.0
    %908 = vmatpush1.msra.mxu0 0.0
    %909 = vmatprep.subr.mxu0 0.0
    %910 = vmatpush1.msra.mxu0 0.0
    %911 = vmatprep.subr.mxu0 0.0
    %912 = vmatpush1.msra.mxu0 0.0
    %913 = vmatprep.mubr.f32.mxu0 0.0
    %914 = vmatmul.mubr.f32.gmra.mrb[0].mxu0 %v205
    %v915 = vpop.f32.mrb[0].mxu0
    %v916 = vadd.f32 %v196, %v915
    %v917 = vpop.f32.mrb[0].mxu0
    %v918 = vadd.f32 %v196, %v917
    %919 = vmatprep.mubr.f32.mxu0 0.0
    %920 = vmatmul.mubr.f32.gmra.mrb[0].mxu0 %v208
    %v921 = vpop.f32.mrb[0].mxu0
    %v922 = vadd.f32 %v201, %v921
    %v923 = vpop.f32.mrb[0].mxu0
    %v924 = vadd.f32 %v201, %v923
    %925 = vdwg.mxu0
    %926 = vmatprep.subr.mxu0 %v694
    %927 = vmatpush1.msra.mxu0 %v693
    %928 = vmatprep.subr.mxu0 0.0
    %929 = vmatpush1.msra.mxu0 0.0
    %930 = vmatprep.subr.mxu0 0.0
    %931 = vmatpush1.msra.mxu0 0.0
    %932 = vmatprep.subr.mxu0 0.0
    %933 = vmatpush1.msra.mxu0 0.0
    %934 = vmatprep.subr.mxu0 0.0
    %935 = vmatpush1.msra.mxu0 0.0
    %936 = vmatprep.subr.mxu0 0.0
    %937 = vmatpush1.msra.mxu0 0.0
    %938 = vmatprep.subr.mxu0 0.0
    %939 = vmatpush1.msra.mxu0 0.0
    %940 = vmatprep.subr.mxu0 0.0
    %941 = vmatpush1.msra.mxu0 0.0
    %942 = vmatprep.subr.mxu0 0.0
    %943 = vmatpush1.msra.mxu0 0.0
    %944 = vmatprep.subr.mxu0 0.0
    %945 = vmatpush1.msra.mxu0 0.0
    %946 = vmatprep.subr.mxu0 0.0
    %947 = vmatpush1.msra.mxu0 0.0
    %948 = vmatprep.subr.mxu0 0.0
    %949 = vmatpush1.msra.mxu0 0.0
    %950 = vmatprep.subr.mxu0 0.0
    %951 = vmatpush1.msra.mxu0 0.0
    %952 = vmatprep.subr.mxu0 0.0
    %953 = vmatpush1.msra.mxu0 0.0
    %954 = vmatprep.subr.mxu0 0.0
    %955 = vmatpush1.msra.mxu0 0.0
    %956 = vmatprep.subr.mxu0 0.0
    %957 = vmatpush1.msra.mxu0 0.0
    %958 = vmatprep.subr.mxu0 0.0
    %959 = vmatpush1.msra.mxu0 0.0
    %960 = vmatprep.subr.mxu0 0.0
    %961 = vmatpush1.msra.mxu0 0.0
    %962 = vmatprep.subr.mxu0 0.0
    %963 = vmatpush1.msra.mxu0 0.0
    %964 = vmatprep.subr.mxu0 0.0
    %965 = vmatpush1.msra.mxu0 0.0
    %966 = vmatprep.subr.mxu0 0.0
    %967 = vmatpush1.msra.mxu0 0.0
    %968 = vmatprep.subr.mxu0 0.0
    %969 = vmatpush1.msra.mxu0 0.0
    %970 = vmatprep.subr.mxu0 0.0
    %971 = vmatpush1.msra.mxu0 0.0
    %972 = vmatprep.subr.mxu0 0.0
    %973 = vmatpush1.msra.mxu0 0.0
    %974 = vmatprep.subr.mxu0 0.0
    %975 = vmatpush1.msra.mxu0 0.0
    %976 = vmatprep.subr.mxu0 0.0
    %977 = vmatpush1.msra.mxu0 0.0
    %978 = vmatprep.subr.mxu0 0.0
    %979 = vmatpush1.msra.mxu0 0.0
    %980 = vmatprep.subr.mxu0 0.0
    %981 = vmatpush1.msra.mxu0 0.0
    %982 = vmatprep.subr.mxu0 0.0
    %983 = vmatpush1.msra.mxu0 0.0
    %984 = vmatprep.subr.mxu0 0.0
    %985 = vmatpush1.msra.mxu0 0.0
    %986 = vmatprep.subr.mxu0 0.0
    %987 = vmatpush1.msra.mxu0 0.0
    %988 = vmatprep.subr.mxu0 0.0
    %989 = vmatpush1.msra.mxu0 0.0
    %990 = vmatprep.mubr.f32.mxu0 0.0
    %991 = vmatmul.mubr.f32.gmra.mrb[0].mxu0 %v205
    %v992 = vpop.f32.mrb[0].mxu0
    %v993 = vadd.f32 %v196, %v992
    %v994 = vpop.f32.mrb[0].mxu0
    %v995 = vadd.f32 %v196, %v994
    %996 = vmatprep.mubr.f32.mxu0 0.0
    %997 = vmatmul.mubr.f32.gmra.mrb[0].mxu0 %v208
    %v998 = vpop.f32.mrb[0].mxu0
    %v999 = vadd.f32 %v201, %v998
    %v1000 = vpop.f32.mrb[0].mxu0
    %v1001 = vadd.f32 %v201, %v1000
    %1002 = vdwg.mxu0
    %s1003 = scalar_lea.vmem [#allocation5], 128
    %1004 = vst [vmem:[%s1003] sm:$0xff] %v762
    %1005 = vst [vmem:[%s1003 + $0x8] sm:$0xff] %v764
    %1006 = vst [vmem:[%s1003 + $0x10] sm:$0xff] %v839
    %1007 = vst [vmem:[%s1003 + $0x18] sm:$0xff] %v841
    %1008 = vst [vmem:[%s1003 + $0x20] sm:$0xff] %v916
    %1009 = vst [vmem:[%s1003 + $0x28] sm:$0xff] %v918
    %1010 = vst [vmem:[%s1003 + $0x30] sm:$0xff] %v993
    %1011 = vst [vmem:[%s1003 + $0x38] sm:$0xff] %v995
    %1012 = vst [vmem:[%s1003 + $0x40] sm:$0xff] %v768
    %1013 = vst [vmem:[%s1003 + $0x48] sm:$0xff] %v770
    %1014 = vst [vmem:[%s1003 + $0x50] sm:$0xff] %v845
    %1015 = vst [vmem:[%s1003 + $0x58] sm:$0xff] %v847
    %1016 = vst [vmem:[%s1003 + $0x60] sm:$0xff] %v922
    %1017 = vst [vmem:[%s1003 + $0x68] sm:$0xff] %v924
    %1018 = vst [vmem:[%s1003 + $0x70] sm:$0xff] %v999
    %1019 = vst [vmem:[%s1003 + $0x78] sm:$0xff] %v1001
    // Predicated region
    $region18: #{tpu_custom_call.1} parent=1 // pred_check
      _
    $region19: #{tpu_custom_call.1} parent=1 // pred_check_branch
      %1021 = sbr.rel (0) target = $region21
    $region20: #{tpu_custom_call.1} parent=1 // pred_region
      %s1023 = ssub.s32 4096, 4096
      %1024 = vsyncadd [#allocation4], %s1023
      %s1025 = sshll.u32 [#allocation5], 4
      %s1026 = int_to_ptr.vmem [resolvable:$true] %s1025
      %1031 = dma.vmem_to_hbm [thread:$0]  %s1026, 4096, %s3, [#allocation4], 1024, 1024, 64
    $region21: #{tpu_custom_call.1} parent=1 // pred_fallthru
      _
    // Predicated region
    $region22: #{tpu_custom_call.1} parent=1 // pred_check
      _
    $region23: #{tpu_custom_call.1} parent=1 // pred_check_branch
      %1033 = sbr.rel (0) target = $region25
    $region24: #{tpu_custom_call.1} parent=1 // pred_region
      %1034 = dma.done [#allocation4], 4096
    $region25: #{tpu_custom_call.1} parent=1 // pred_fallthru
      _
    %1035 = vsyncpa [#allocation3], 1
    %1036 = vsyncpa [#allocation4], 1

</llo_original>
